<compile_context>
chip_gen: v7x
topology: tpu7x:2x2x1
jax: 0.10.0
libtpu: 0.0.40
codegen_flags: <defaults>
</compile_context>

<pallas_src>
import functools

import jax
import jax.numpy as jnp
from jax.experimental import pallas as pl
from jax.experimental.pallas import tpu as pltpu

_NSPLIT = 2                       # leading parallel grid axis for the stats pass
_LANE = 128
_VMEM_LIMIT = 48 * 1024 * 1024    # explicit scoped-VMEM limit (fits v7x 64 MiB)
_TILE_BUDGET = 36 * 1024 * 1024   # budget for block double-buffers when picking TM


def _round_up(a, b):
    return ((a + b - 1) // b) * b


# --------------------------------------------------------------------------- #
# Kernels
# --------------------------------------------------------------------------- #
def _fused_kernel(x_ref, w_ref, g_ref, b_ref, o_ref, *, m_real, eps):
    """Small-problem path: conv matmul + training-mode BN fully fused.

    x_ref: (M, C) activation, w_ref: (C, C) conv weight (C_in, C_out),
    g_ref/b_ref: (1, C) BN gamma/beta (f32).  The conv bias cancels in
    training-mode BN ((y - mean y) == (z - mean z)), so it is not needed.
    """
    z = jnp.dot(x_ref[...], w_ref[...], preferred_element_type=jnp.float32)
    s = jnp.sum(z, axis=0, keepdims=True)
    q = jnp.sum(z * z, axis=0, keepdims=True)
    mu = s * (1.0 / m_real)
    var = jnp.maximum(q * (1.0 / m_real) - mu * mu, 0.0)
    scale = g_ref[...] * jax.lax.rsqrt(var + eps)
    o_ref[...] = ((z - mu) * scale + b_ref[...]).astype(o_ref.dtype)


def _stats_kernel(x_ref, w_ref, sum_ref, sq_ref):
    """Pass 1: z = x @ W (bias-free); accumulate per-channel sum / sum of squares.

    sum_ref / sq_ref are (8, Cp) VMEM-resident accumulators (one block per
    parallel split); all 8 sublanes carry the same value (broadcast add).
    """
    @pl.when(pl.program_id(1) == 0)
    def _():
        sum_ref[...] = jnp.zeros_like(sum_ref)
        sq_ref[...] = jnp.zeros_like(sq_ref)

    z = jnp.dot(x_ref[...], w_ref[...], preferred_element_type=jnp.float32)
    sum_ref[...] = sum_ref[...] + jnp.sum(z, axis=0, keepdims=True)
    sq_ref[...] = sq_ref[...] + jnp.sum(z * z, axis=0, keepdims=True)


def _apply_kernel(x_ref, w_ref, s_ref, o_ref):
    """Pass 2: out = x @ W_folded + shift  (conv bias + BN folded host-side)."""
    y = jnp.dot(x_ref[...], w_ref[...], preferred_element_type=jnp.float32)
    o_ref[...] = (y + s_ref[...]).astype(o_ref.dtype)


# --------------------------------------------------------------------------- #
# Wrapper
# --------------------------------------------------------------------------- #
def _pick_tile(mp_rows, cp, in_bytes, out_bytes, max_tile_m):
    """Largest row tile (multiple of 8) whose double-buffers fit the VMEM budget,
    capped so tiny problems don't get blown up by padding."""
    cap = max(8, _round_up(pl.cdiv(mp_rows, _NSPLIT), 8))
    best = 8
    for tm in (2048, 1024, 512, 256, 128, 64, 32, 16, 8):
        if tm > max_tile_m:
            continue
        need = (2 * tm * cp * in_bytes          # X tile, double-buffered
                + 2 * tm * cp * out_bytes       # out tile, double-buffered
                + 2 * cp * cp * in_bytes)       # weight (counted conservatively 2x)
        if need <= _TILE_BUDGET:
            best = tm
            break
    return min(best, cap)


def cb11_forward(x, weight, bias, gamma, beta, H, W, *, eps=1e-5,
                 running_mean=None, running_var=None, max_tile_m=1024,
                 fuse_bytes=12 * 1024 * 1024):
    """CB11 forward.

    x      : (B, N, C) with N == H*W
    weight : (C, C)  pointwise Conv2d weight (PyTorch (C_out, C_in, 1, 1) squeezed)
    bias   : (C,)    conv bias
    gamma  : (C,)    BatchNorm2d weight
    beta   : (C,)    BatchNorm2d bias
    running_mean/var : optional (C,) -> eval-mode BN; None -> training-mode batch
                       statistics (the module's default mode).
    returns: (B, N, C)
    """
    B, N, C = x.shape
    assert N == H * W, (N, H, W)
    M = B * N
    xf = x.reshape(M, C)                               # channels on TPU lanes
    in_bytes = jnp.dtype(x.dtype).itemsize
    out_bytes = in_bytes

    training = (running_mean is None) or (running_var is None)
    gamma32 = gamma.reshape(1, C).astype(jnp.float32)
    beta32 = beta.reshape(1, C).astype(jnp.float32)
    bias32 = bias.reshape(C).astype(jnp.float32)
    wt32 = jnp.transpose(weight).astype(jnp.float32)   # (C_in, C_out)

    # ---------------- small-problem fused fast path (training mode) ----------
    small = (M * C * (2 * in_bytes + 4) + C * C * in_bytes) <= fuse_bytes
    if training and small:
        out = pl.pallas_call(
            functools.partial(_fused_kernel, m_real=float(M), eps=float(eps)),
            out_shape=jax.ShapeDtypeStruct((M, C), x.dtype),
            compiler_params=pltpu.CompilerParams(vmem_limit_bytes=_VMEM_LIMIT),
        )(xf, wt32.astype(x.dtype), gamma32, beta32)
        return out.reshape(B, N, C)

    # ---------------- streaming two-pass path --------------------------------
    # Lane-dense packing for C < 128: fold r rows into one 128-lane row and use a
    # block-diagonal weight, so loads, MXU columns and stores are all lane-dense.
    if C < _LANE and _LANE % C == 0:
        r = _LANE // C
    else:
        r = 1
    Cp = r * C

    mp_raw = pl.cdiv(M, r)
    TM = _pick_tile(mp_raw, Cp, in_bytes, out_bytes, max_tile_m)
    tiles_per_split = pl.cdiv(mp_raw, _NSPLIT * TM)
    Mp = _NSPLIT * tiles_per_split * TM                # packed rows (padded)
    M_pad = Mp * r                                     # original rows (padded)

    xp = xf
    if M_pad != M:
        xp = jnp.pad(xf, ((0, M_pad - M), (0, 0)))     # zero rows: stats-neutral
    xp = xp.reshape(Mp, Cp)                            # row-major repack (free)

    eye_r = jnp.eye(r, dtype=jnp.float32)

    if training:
        w_big = jnp.kron(eye_r, wt32).astype(x.dtype)  # (Cp, Cp) block-diagonal
        sum_o, sq_o = pl.pallas_call(
            _stats_kernel,
            out_shape=(jax.ShapeDtypeStruct((_NSPLIT * 8, Cp), jnp.float32),
                       jax.ShapeDtypeStruct((_NSPLIT * 8, Cp), jnp.float32)),
            grid=(_NSPLIT, tiles_per_split),
            in_specs=[
                pl.BlockSpec((TM, Cp), lambda c, i: (c * tiles_per_split + i, 0)),
                pl.BlockSpec((Cp, Cp), lambda c, i: (0, 0)),
            ],
            out_specs=(pl.BlockSpec((8, Cp), lambda c, i: (c, 0)),
                       pl.BlockSpec((8, Cp), lambda c, i: (c, 0))),
            compiler_params=pltpu.CompilerParams(
                dimension_semantics=("parallel", "arbitrary"),
                vmem_limit_bytes=_VMEM_LIMIT),
        )(xp, w_big)
        # Fold the per-split / per-packed-group partials (tiny O(C) host math).
        sum_z = sum_o.reshape(_NSPLIT, 8, Cp)[:, 0, :].sum(0).reshape(r, C).sum(0)
        sq_z = sq_o.reshape(_NSPLIT, 8, Cp)[:, 0, :].sum(0).reshape(r, C).sum(0)
        mu_z = sum_z / M                               # padded rows contribute 0
        var = jnp.maximum(sq_z / M - mu_z * mu_z, 0.0)
        mu_y = mu_z + bias32
    else:
        mu_y = running_mean.reshape(C).astype(jnp.float32)
        var = running_var.reshape(C).astype(jnp.float32)

    # Fold BN into the pointwise conv:
    #   out = (x @ W + b - mu) * gamma * rsqrt(var + eps) + beta
    #       =  x @ (W * scale) + ((b - mu) * scale + beta)
    scale = gamma32.reshape(C) * jax.lax.rsqrt(var + eps)
    shift = (bias32 - mu_y) * scale + beta32.reshape(C)
    w_fold_big = jnp.kron(eye_r, wt32 * scale[None, :]).astype(x.dtype)
    shift_big = jnp.tile(shift.reshape(1, C), (1, r)).astype(jnp.float32)

    n_tiles = Mp // TM
    out_p = pl.pallas_call(
        _apply_kernel,
        out_shape=jax.ShapeDtypeStruct((Mp, Cp), x.dtype),
        grid=(n_tiles,),
        in_specs=[
            pl.BlockSpec((TM, Cp), lambda i: (i, 0)),
            pl.BlockSpec((Cp, Cp), lambda i: (0, 0)),
            pl.BlockSpec((1, Cp), lambda i: (0, 0)),
        ],
        out_specs=pl.BlockSpec((TM, Cp), lambda i: (i, 0)),
        compiler_params=pltpu.CompilerParams(
            dimension_semantics=("parallel",),
            vmem_limit_bytes=_VMEM_LIMIT),
    )(xp, w_fold_big, shift_big)

    out = out_p.reshape(M_pad, C)[:M]
    # TODO(synk): BatchNorm running_mean/running_var momentum updates (training-time
    # buffer side effects; PyTorch uses the unbiased variance there) are not emitted;
    # the forward output itself is exact.
    return out.reshape(B, N, C)


# --------------------------------------------------------------------------- #
# Reference + self-test
# --------------------------------------------------------------------------- #
def _reference(x, weight, bias, gamma, beta, eps, running_mean=None, running_var=None):
    """Pure-JAX reference: 1x1 conv (channel matmul) + BatchNorm2d."""
    y = jnp.einsum("bnc,oc->bno", x, weight) + bias[None, None, :]
    if running_mean is None:
        mu = jnp.mean(y, axis=(0, 1))
        var = jnp.var(y, axis=(0, 1))      # biased variance, as BN normalization uses
    else:
        mu, var = running_mean, running_var
    yhat = (y - mu) * jax.lax.rsqrt(var + eps)
    return yhat * gamma[None, None, :] + beta[None, None, :]


if __name__ == "__main__":
    eps = 1e-5
    key = jax.random.PRNGKey(0)

    def make(B, H, W, C, k):
        N = H * W
        kx, kw, kb, kg, kbt = jax.random.split(k, 5)
        x = jax.random.normal(kx, (B, N, C), dtype=jnp.float32)
        std = (2.0 / C) ** 0.5                                   # kaiming fan_in, relu
        weight = std * jax.random.normal(kw, (C, C), dtype=jnp.float32)
        bound = 1.0 / (C ** 0.5)
        bias = jax.random.uniform(kb, (C,), minval=-bound, maxval=bound,
                                  dtype=jnp.float32)
        gamma = 1.0 + 0.1 * jax.random.normal(kg, (C,), dtype=jnp.float32)
        beta = 0.1 * jax.random.normal(kbt, (C,), dtype=jnp.float32)
        return x, weight, bias, gamma, beta

    k1, k2 = jax.random.split(key)
    ok = True

    # Config 1: B=2, 16x16, C=32  -> fused small-problem path.
    B, H, W, C = 2, 16, 16, 32
    x, w, b, g, bt = make(B, H, W, C, k1)
    ref = _reference(x, w, b, g, bt, eps)

    out_fused = jax.block_until_ready(cb11_forward(x, w, b, g, bt, H, W, eps=eps))
    ok &= bool(jnp.allclose(out_fused, ref, atol=2e-4, rtol=2e-4))

    # Same config forced through the streaming two-pass (lane-packed, split) path.
    out_stream = jax.block_until_ready(
        cb11_forward(x, w, b, g, bt, H, W, eps=eps, fuse_bytes=0))
    ok &= bool(jnp.allclose(out_stream, ref, atol=2e-4, rtol=2e-4))

    # Eval-mode BN (running statistics) -> single folded apply pass.
    rm = 0.05 * jax.random.normal(jax.random.PRNGKey(3), (C,), dtype=jnp.float32)
    rv = 1.0 + 0.1 * jax.random.uniform(jax.random.PRNGKey(4), (C,), dtype=jnp.float32)
    ref_eval = _reference(x, w, b, g, bt, eps, rm, rv)
    out_eval = jax.block_until_ready(
        cb11_forward(x, w, b, g, bt, H, W, eps=eps, running_mean=rm, running_var=rv))
    ok &= bool(jnp.allclose(out_eval, ref_eval, atol=2e-4, rtol=2e-4))

    # Config 2: awkward M (1*9*13 = 117) and C=48 (no 128 divisor) -> padding, r=1.
    B, H, W, C = 1, 9, 13, 48
    x, w, b, g, bt = make(B, H, W, C, k2)
    ref2 = _reference(x, w, b, g, bt, eps)
    out2 = jax.block_until_ready(
        cb11_forward(x, w, b, g, bt, H, W, eps=eps, fuse_bytes=0))
    ok &= bool(jnp.allclose(out2, ref2, atol=2e-4, rtol=2e-4))

    assert ok
    print("KERNEL_OK")
</pallas_src>

<mosaic_0001>
module attributes {stable_mosaic.version = 11 : i64} {
  func.func @_fused_kernel(%arg0: memref<512x32xf32, #tpu.memory_space<vmem>>, %arg1: memref<32x32xf32, #tpu.memory_space<vmem>>, %arg2: memref<1x32xf32, #tpu.memory_space<vmem>>, %arg3: memref<1x32xf32, #tpu.memory_space<vmem>>, %arg4: memref<512x32xf32, #tpu.memory_space<vmem>>) attributes {dimension_semantics = [], scalar_prefetch = 0 : i64, scratch_operands = 0 : i64, tpu.core_type = #tpu.core_type<tc>} {
    %c0 = arith.constant 0 : index
    %c0_0 = arith.constant 0 : index
    %0 = vector.load %arg0[%c0, %c0_0] : memref<512x32xf32, #tpu.memory_space<vmem>>, vector<512x32xf32>
    %c0_1 = arith.constant 0 : index
    %c0_2 = arith.constant 0 : index
    %1 = vector.load %arg1[%c0_1, %c0_2] : memref<32x32xf32, #tpu.memory_space<vmem>>, vector<32x32xf32>
    %cst = arith.constant dense<0.000000e+00> : vector<512x32xf32>
    %2 = tpu.matmul %0, %1, %cst {dimension_numbers = #tpu.dot_dimension_numbers<[1], [0], [0], [1], [0, 0, 1, 1], [], []>} : vector<512x32xf32>, vector<32x32xf32>, vector<512x32xf32> -> vector<512x32xf32>
    %cst_3 = arith.constant dense<0.000000e+00> : vector<32xf32>
    %3 = vector.multi_reduction <add>, %2, %cst_3 [0] : vector<512x32xf32> to vector<32xf32>
    %4 = vector.shape_cast %3 : vector<32xf32> to vector<1x32xf32>
    %5 = arith.mulf %2, %2 : vector<512x32xf32>
    %cst_4 = arith.constant dense<0.000000e+00> : vector<32xf32>
    %6 = vector.multi_reduction <add>, %5, %cst_4 [0] : vector<512x32xf32> to vector<32xf32>
    %7 = vector.shape_cast %6 : vector<32xf32> to vector<1x32xf32>
    %cst_5 = arith.constant 0.001953125 : f32
    %8 = vector.broadcast %cst_5 : f32 to vector<1x32xf32>
    %9 = arith.mulf %4, %8 : vector<1x32xf32>
    %cst_6 = arith.constant 0.001953125 : f32
    %10 = vector.broadcast %cst_6 : f32 to vector<1x32xf32>
    %11 = arith.mulf %7, %10 : vector<1x32xf32>
    %12 = arith.mulf %9, %9 : vector<1x32xf32>
    %13 = arith.subf %11, %12 : vector<1x32xf32>
    %cst_7 = arith.constant 0.000000e+00 : f32
    %14 = vector.broadcast %cst_7 : f32 to vector<1x32xf32>
    %15 = arith.maximumf %13, %14 : vector<1x32xf32>
    %c0_8 = arith.constant 0 : index
    %c0_9 = arith.constant 0 : index
    %16 = vector.load %arg2[%c0_8, %c0_9] : memref<1x32xf32, #tpu.memory_space<vmem>>, vector<1x32xf32>
    %cst_10 = arith.constant 9.99999974E-6 : f32
    %17 = vector.broadcast %cst_10 : f32 to vector<1x32xf32>
    %18 = arith.addf %15, %17 : vector<1x32xf32>
    %19 = math.rsqrt %18 : vector<1x32xf32>
    %20 = arith.mulf %16, %19 : vector<1x32xf32>
    %21 = vector.broadcast %9 : vector<1x32xf32> to vector<512x32xf32>
    %22 = arith.subf %2, %21 : vector<512x32xf32>
    %23 = vector.broadcast %20 : vector<1x32xf32> to vector<512x32xf32>
    %24 = arith.mulf %22, %23 : vector<512x32xf32>
    %c0_11 = arith.constant 0 : index
    %c0_12 = arith.constant 0 : index
    %25 = vector.load %arg3[%c0_11, %c0_12] : memref<1x32xf32, #tpu.memory_space<vmem>>, vector<1x32xf32>
    %26 = vector.broadcast %25 : vector<1x32xf32> to vector<512x32xf32>
    %27 = arith.addf %24, %26 : vector<512x32xf32>
    %c0_13 = arith.constant 0 : index
    %c0_14 = arith.constant 0 : index
    %28 = vector.load %arg4[%c0_13, %c0_14] : memref<512x32xf32, #tpu.memory_space<vmem>>, vector<512x32xf32>
    tpu.vector_store %arg4[%c0_13, %c0_14], %27 {strides = array<i32>} : memref<512x32xf32, #tpu.memory_space<vmem>>, vector<512x32xf32>,
    return
  }
}

</mosaic_0001>

<llo_original>
// kernel: tpu_custom_call.1
$region0: #{tpu_custom_call.1}
  #allocation0 [shape = 'u32[]', space=smem, size = 0x4, offset = 0x4, fixed_abs, tag = 'smem constant byte address 0x4 - core index']
  #allocation1 [shape = 'u32[144,128]{1,0:T(1,128)}', space=vmem, size = 0x12000, scoped, tag = 'internal scratch']
  %s0 = inlined_call_operand.vmem [shape: f32[512,32], index: 0, kind: input, shape index: {}]
  %s1 = inlined_call_operand.vmem [shape: f32[32,32], index: 1, kind: input, shape index: {}]
  %s2 = inlined_call_operand.vmem [shape: f32[1,32], index: 2, kind: input, shape index: {}]
  %s3 = inlined_call_operand.vmem [shape: f32[1,32], index: 3, kind: input, shape index: {}]
  %s4 = inlined_call_operand.vmem [shape: f32[512,32], index: 4, kind: output, shape index: {}]
  %s5 = sld [smem:[#allocation0]]
  $region26: #{tpu_custom_call.1} parent=0
    _
  %s7 = ssub.s32 1, %s5
  %s8 = scalar_select 0, %s7, %s5
  // Predicated region
  $region2: #{tpu_custom_call.1} parent=0 // pred_check
    _
  $region3: #{tpu_custom_call.1} parent=0 // pred_check_branch
    %10 = sbr.rel (0) target = $region5
  $region4: #{tpu_custom_call.1} parent=0 // pred_region
    _
  $region5: #{tpu_custom_call.1} parent=0 // pred_fallthru
    _
  // Predicated region
  $region6: #{tpu_custom_call.1} parent=0 // pred_check
    _
  $region7: #{tpu_custom_call.1} parent=0 // pred_check_branch
    %12 = sbr.rel (0) target = $region9
  $region8: #{tpu_custom_call.1} parent=0 // pred_region
    _
  $region9: #{tpu_custom_call.1} parent=0 // pred_fallthru
    _
  // Predicated region
  $region10: #{tpu_custom_call.1} parent=0 // pred_check
    _
  $region11: #{tpu_custom_call.1} parent=0 // pred_check_branch
    %14 = sbr.rel (0) target = $region13
  $region12: #{tpu_custom_call.1} parent=0 // pred_region
    _
  $region13: #{tpu_custom_call.1} parent=0 // pred_fallthru
    _
  // Predicated region
  $region14: #{tpu_custom_call.1} parent=0 // pred_check
    _
  $region15: #{tpu_custom_call.1} parent=0 // pred_check_branch
    %16 = sbr.rel (0) target = $region17
  $region16: #{tpu_custom_call.1} parent=0 // pred_region
    _
  $region17: #{tpu_custom_call.1} parent=0 // pred_fallthru
    _
  %v17 = vld [vmem:[%s0] sm:$0xff]
  %v18 = vld [vmem:[%s0 + $0x8] sm:$0xff]
  %v19 = vld [vmem:[%s0 + $0x10] sm:$0xff]
  %v20 = vld [vmem:[%s0 + $0x18] sm:$0xff]
  %v21 = vld [vmem:[%s0 + $0x20] sm:$0xff]
  %v22 = vld [vmem:[%s0 + $0x28] sm:$0xff]
  %v23 = vld [vmem:[%s0 + $0x30] sm:$0xff]
  %v24 = vld [vmem:[%s0 + $0x38] sm:$0xff]
  %v25 = vld [vmem:[%s0 + $0x40] sm:$0xff]
  %v26 = vld [vmem:[%s0 + $0x48] sm:$0xff]
  %v27 = vld [vmem:[%s0 + $0x50] sm:$0xff]
  %v28 = vld [vmem:[%s0 + $0x58] sm:$0xff]
  %v29 = vld [vmem:[%s0 + $0x60] sm:$0xff]
  %v30 = vld [vmem:[%s0 + $0x68] sm:$0xff]
  %v31 = vld [vmem:[%s0 + $0x70] sm:$0xff]
  %v32 = vld [vmem:[%s0 + $0x78] sm:$0xff]
  %v33 = vld [vmem:[%s0 + $0x80] sm:$0xff]
  %v34 = vld [vmem:[%s0 + $0x88] sm:$0xff]
  %v35 = vld [vmem:[%s0 + $0x90] sm:$0xff]
  %v36 = vld [vmem:[%s0 + $0x98] sm:$0xff]
  %v37 = vld [vmem:[%s0 + $0xa0] sm:$0xff]
  %v38 = vld [vmem:[%s0 + $0xa8] sm:$0xff]
  %v39 = vld [vmem:[%s0 + $0xb0] sm:$0xff]
  %v40 = vld [vmem:[%s0 + $0xb8] sm:$0xff]
  %v41 = vld [vmem:[%s0 + $0xc0] sm:$0xff]
  %v42 = vld [vmem:[%s0 + $0xc8] sm:$0xff]
  %v43 = vld [vmem:[%s0 + $0xd0] sm:$0xff]
  %v44 = vld [vmem:[%s0 + $0xd8] sm:$0xff]
  %v45 = vld [vmem:[%s0 + $0xe0] sm:$0xff]
  %v46 = vld [vmem:[%s0 + $0xe8] sm:$0xff]
  %v47 = vld [vmem:[%s0 + $0xf0] sm:$0xff]
  %v48 = vld [vmem:[%s0 + $0xf8] sm:$0xff]
  %v49 = vld [vmem:[%s0 + $0x100] sm:$0xff]
  %v50 = vld [vmem:[%s0 + $0x108] sm:$0xff]
  %v51 = vld [vmem:[%s0 + $0x110] sm:$0xff]
  %v52 = vld [vmem:[%s0 + $0x118] sm:$0xff]
  %v53 = vld [vmem:[%s0 + $0x120] sm:$0xff]
  %v54 = vld [vmem:[%s0 + $0x128] sm:$0xff]
  %v55 = vld [vmem:[%s0 + $0x130] sm:$0xff]
  %v56 = vld [vmem:[%s0 + $0x138] sm:$0xff]
  %v57 = vld [vmem:[%s0 + $0x140] sm:$0xff]
  %v58 = vld [vmem:[%s0 + $0x148] sm:$0xff]
  %v59 = vld [vmem:[%s0 + $0x150] sm:$0xff]
  %v60 = vld [vmem:[%s0 + $0x158] sm:$0xff]
  %v61 = vld [vmem:[%s0 + $0x160] sm:$0xff]
  %v62 = vld [vmem:[%s0 + $0x168] sm:$0xff]
  %v63 = vld [vmem:[%s0 + $0x170] sm:$0xff]
  %v64 = vld [vmem:[%s0 + $0x178] sm:$0xff]
  %v65 = vld [vmem:[%s0 + $0x180] sm:$0xff]
  %v66 = vld [vmem:[%s0 + $0x188] sm:$0xff]
  %v67 = vld [vmem:[%s0 + $0x190] sm:$0xff]
  %v68 = vld [vmem:[%s0 + $0x198] sm:$0xff]
  %v69 = vld [vmem:[%s0 + $0x1a0] sm:$0xff]
  %v70 = vld [vmem:[%s0 + $0x1a8] sm:$0xff]
  %v71 = vld [vmem:[%s0 + $0x1b0] sm:$0xff]
  %v72 = vld [vmem:[%s0 + $0x1b8] sm:$0xff]
  %v73 = vld [vmem:[%s0 + $0x1c0] sm:$0xff]
  %v74 = vld [vmem:[%s0 + $0x1c8] sm:$0xff]
  %v75 = vld [vmem:[%s0 + $0x1d0] sm:$0xff]
  %v76 = vld [vmem:[%s0 + $0x1d8] sm:$0xff]
  %v77 = vld [vmem:[%s0 + $0x1e0] sm:$0xff]
  %v78 = vld [vmem:[%s0 + $0x1e8] sm:$0xff]
  %v79 = vld [vmem:[%s0 + $0x1f0] sm:$0xff]
  %v80 = vld [vmem:[%s0 + $0x1f8] sm:$0xff]
  %v81 = vld [vmem:[%s1] sm:$0xff]
  %v82 = vld [vmem:[%s1 + $0x8] sm:$0xff]
  %v83 = vld [vmem:[%s1 + $0x10] sm:$0xff]
  %v84 = vld [vmem:[%s1 + $0x18] sm:$0xff]
  %vm85 = vcmask 261120
  %v87 = vsel %vm85, %v17, 0
  %v90 = vsel %vm85, %v18, 0
  %v93 = vsel %vm85, %v19, 0
  %v96 = vsel %vm85, %v20, 0
  %v99 = vsel %vm85, %v21, 0
  %v102 = vsel %vm85, %v22, 0
  %v105 = vsel %vm85, %v23, 0
  %v108 = vsel %vm85, %v24, 0
  %v111 = vsel %vm85, %v25, 0
  %v114 = vsel %vm85, %v26, 0
  %v117 = vsel %vm85, %v27, 0
  %v120 = vsel %vm85, %v28, 0
  %v123 = vsel %vm85, %v29, 0
  %v126 = vsel %vm85, %v30, 0
  %v129 = vsel %vm85, %v31, 0
  %v132 = vsel %vm85, %v32, 0
  %v135 = vsel %vm85, %v33, 0
  %v138 = vsel %vm85, %v34, 0
  %v141 = vsel %vm85, %v35, 0
  %v144 = vsel %vm85, %v36, 0
  %v147 = vsel %vm85, %v37, 0
  %v150 = vsel %vm85, %v38, 0
  %v153 = vsel %vm85, %v39, 0
  %v156 = vsel %vm85, %v40, 0
  %v159 = vsel %vm85, %v41, 0
  %v162 = vsel %vm85, %v42, 0
  %v165 = vsel %vm85, %v43, 0
  %v168 = vsel %vm85, %v44, 0
  %v171 = vsel %vm85, %v45, 0
  %v174 = vsel %vm85, %v46, 0
  %v177 = vsel %vm85, %v47, 0
  %v180 = vsel %vm85, %v48, 0
  %v183 = vsel %vm85, %v49, 0
  %v186 = vsel %vm85, %v50, 0
  %v189 = vsel %vm85, %v51, 0
  %v192 = vsel %vm85, %v52, 0
  %v195 = vsel %vm85, %v53, 0
  %v198 = vsel %vm85, %v54, 0
  %v201 = vsel %vm85, %v55, 0
  %v204 = vsel %vm85, %v56, 0
  %v207 = vsel %vm85, %v57, 0
  %v210 = vsel %vm85, %v58, 0
  %v213 = vsel %vm85, %v59, 0
  %v216 = vsel %vm85, %v60, 0
  %v219 = vsel %vm85, %v61, 0
  %v222 = vsel %vm85, %v62, 0
  %v225 = vsel %vm85, %v63, 0
  %v228 = vsel %vm85, %v64, 0
  %v231 = vsel %vm85, %v65, 0
  %v234 = vsel %vm85, %v66, 0
  %v237 = vsel %vm85, %v67, 0
  %v240 = vsel %vm85, %v68, 0
  %v243 = vsel %vm85, %v69, 0
  %v246 = vsel %vm85, %v70, 0
  %v249 = vsel %vm85, %v71, 0
  %v252 = vsel %vm85, %v72, 0
  %v255 = vsel %vm85, %v73, 0
  %v258 = vsel %vm85, %v74, 0
  %v261 = vsel %vm85, %v75, 0
  %v264 = vsel %vm85, %v76, 0
  %v267 = vsel %vm85, %v77, 0
  %v270 = vsel %vm85, %v78, 0
  %v273 = vsel %vm85, %v79, 0
  %v276 = vsel %vm85, %v80, 0
  %278 = vmatprep.subr.mxu0 0.0
  %279 = vmatpush1.msra.mxu0 %v81
  %280 = vmatprep.subr.mxu0 0.0
  %281 = vmatpush1.msra.mxu0 %v82
  %282 = vmatprep.subr.mxu0 0.0
  %283 = vmatpush1.msra.mxu0 %v83
  %284 = vmatprep.subr.mxu0 0.0
  %285 = vmatpush1.msra.mxu0 %v84
  %286 = vmatprep.subr.mxu0 0.0
  %287 = vmatpush1.msra.mxu0 0.0
  %288 = vmatprep.subr.mxu0 0.0
  %289 = vmatpush1.msra.mxu0 0.0
  %290 = vmatprep.subr.mxu0 0.0
  %291 = vmatpush1.msra.mxu0 0.0
  %292 = vmatprep.subr.mxu0 0.0
  %293 = vmatpush1.msra.mxu0 0.0
  %294 = vmatprep.subr.mxu0 0.0
  %295 = vmatpush1.msra.mxu0 0.0
  %296 = vmatprep.subr.mxu0 0.0
  %297 = vmatpush1.msra.mxu0 0.0
  %298 = vmatprep.subr.mxu0 0.0
  %299 = vmatpush1.msra.mxu0 0.0
  %300 = vmatprep.subr.mxu0 0.0
  %301 = vmatpush1.msra.mxu0 0.0
  %302 = vmatprep.subr.mxu0 0.0
  %303 = vmatpush1.msra.mxu0 0.0
  %304 = vmatprep.subr.mxu0 0.0
  %305 = vmatpush1.msra.mxu0 0.0
  %306 = vmatprep.subr.mxu0 0.0
  %307 = vmatpush1.msra.mxu0 0.0
  %308 = vmatprep.subr.mxu0 0.0
  %309 = vmatpush1.msra.mxu0 0.0
  %310 = vmatprep.subr.mxu0 0.0
  %311 = vmatpush1.msra.mxu0 0.0
  %312 = vmatprep.subr.mxu0 0.0
  %313 = vmatpush1.msra.mxu0 0.0
  %314 = vmatprep.subr.mxu0 0.0
  %315 = vmatpush1.msra.mxu0 0.0
  %316 = vmatprep.subr.mxu0 0.0
  %317 = vmatpush1.msra.mxu0 0.0
  %318 = vmatprep.subr.mxu0 0.0
  %319 = vmatpush1.msra.mxu0 0.0
  %320 = vmatprep.subr.mxu0 0.0
  %321 = vmatpush1.msra.mxu0 0.0
  %322 = vmatprep.subr.mxu0 0.0
  %323 = vmatpush1.msra.mxu0 0.0
  %324 = vmatprep.subr.mxu0 0.0
  %325 = vmatpush1.msra.mxu0 0.0
  %326 = vmatprep.subr.mxu0 0.0
  %327 = vmatpush1.msra.mxu0 0.0
  %328 = vmatprep.subr.mxu0 0.0
  %329 = vmatpush1.msra.mxu0 0.0
  %330 = vmatprep.subr.mxu0 0.0
  %331 = vmatpush1.msra.mxu0 0.0
  %332 = vmatprep.subr.mxu0 0.0
  %333 = vmatpush1.msra.mxu0 0.0
  %334 = vmatprep.subr.mxu0 0.0
  %335 = vmatpush1.msra.mxu0 0.0
  %336 = vmatprep.subr.mxu0 0.0
  %337 = vmatpush1.msra.mxu0 0.0
  %338 = vmatprep.subr.mxu0 0.0
  %339 = vmatpush1.msra.mxu0 0.0
  %340 = vmatprep.subr.mxu0 0.0
  %341 = vmatpush1.msra.mxu0 0.0
  %342 = vmatprep.mubr.f32.mxu0 0.0
  %343 = vmatmul.mubr.f32.gmra.mrb[0].mxu0 %v87
  %v344 = vpop.f32.mrb[0].mxu0
  %v345 = vadd.f32 0.0, %v344
  %v346 = vpop.f32.mrb[0].mxu0
  %347 = vmatprep.mubr.f32.mxu0 0.0
  %348 = vmatmul.mubr.f32.gmra.mrb[0].mxu0 %v90
  %v349 = vpop.f32.mrb[0].mxu0
  %v350 = vadd.f32 0.0, %v349
  %v351 = vpop.f32.mrb[0].mxu0
  %352 = vmatprep.mubr.f32.mxu0 0.0
  %353 = vmatmul.mubr.f32.gmra.mrb[0].mxu0 %v93
  %v354 = vpop.f32.mrb[0].mxu0
  %v355 = vadd.f32 0.0, %v354
  %v356 = vpop.f32.mrb[0].mxu0
  %357 = vmatprep.mubr.f32.mxu0 0.0
  %358 = vmatmul.mubr.f32.gmra.mrb[0].mxu0 %v96
  %v359 = vpop.f32.mrb[0].mxu0
  %v360 = vadd.f32 0.0, %v359
  %v361 = vpop.f32.mrb[0].mxu0
  %362 = vmatprep.mubr.f32.mxu0 0.0
  %363 = vmatmul.mubr.f32.gmra.mrb[0].mxu0 %v99
  %v364 = vpop.f32.mrb[0].mxu0
  %v365 = vadd.f32 0.0, %v364
  %v366 = vpop.f32.mrb[0].mxu0
  %367 = vmatprep.mubr.f32.mxu0 0.0
  %368 = vmatmul.mubr.f32.gmra.mrb[0].mxu0 %v102
  %v369 = vpop.f32.mrb[0].mxu0
  %v370 = vadd.f32 0.0, %v369
  %v371 = vpop.f32.mrb[0].mxu0
  %372 = vmatprep.mubr.f32.mxu0 0.0
  %373 = vmatmul.mubr.f32.gmra.mrb[0].mxu0 %v105
  %v374 = vpop.f32.mrb[0].mxu0
  %v375 = vadd.f32 0.0, %v374
  %v376 = vpop.f32.mrb[0].mxu0
  %377 = vmatprep.mubr.f32.mxu0 0.0
  %378 = vmatmul.mubr.f32.gmra.mrb[0].mxu0 %v108
  %v379 = vpop.f32.mrb[0].mxu0
  %v380 = vadd.f32 0.0, %v379
  %v381 = vpop.f32.mrb[0].mxu0
  %382 = vmatprep.mubr.f32.mxu0 0.0
  %383 = vmatmul.mubr.f32.gmra.mrb[0].mxu0 %v111
  %v384 = vpop.f32.mrb[0].mxu0
  %v385 = vadd.f32 0.0, %v384
  %v386 = vpop.f32.mrb[0].mxu0
  %387 = vmatprep.mubr.f32.mxu0 0.0
  %388 = vmatmul.mubr.f32.gmra.mrb[0].mxu0 %v114
  %v389 = vpop.f32.mrb[0].mxu0
  %v390 = vadd.f32 0.0, %v389
  %v391 = vpop.f32.mrb[0].mxu0
  %392 = vmatprep.mubr.f32.mxu0 0.0
  %393 = vmatmul.mubr.f32.gmra.mrb[0].mxu0 %v117
  %v394 = vpop.f32.mrb[0].mxu0
  %v395 = vadd.f32 0.0, %v394
  %v396 = vpop.f32.mrb[0].mxu0
  %397 = vmatprep.mubr.f32.mxu0 0.0
  %398 = vmatmul.mubr.f32.gmra.mrb[0].mxu0 %v120
  %v399 = vpop.f32.mrb[0].mxu0
  %v400 = vadd.f32 0.0, %v399
  %v401 = vpop.f32.mrb[0].mxu0
  %402 = vmatprep.mubr.f32.mxu0 0.0
  %403 = vmatmul.mubr.f32.gmra.mrb[0].mxu0 %v123
  %v404 = vpop.f32.mrb[0].mxu0
  %v405 = vadd.f32 0.0, %v404
  %v406 = vpop.f32.mrb[0].mxu0
  %407 = vmatprep.mubr.f32.mxu0 0.0
  %408 = vmatmul.mubr.f32.gmra.mrb[0].mxu0 %v126
  %v409 = vpop.f32.mrb[0].mxu0
  %v410 = vadd.f32 0.0, %v409
  %v411 = vpop.f32.mrb[0].mxu0
  %412 = vmatprep.mubr.f32.mxu0 0.0
  %413 = vmatmul.mubr.f32.gmra.mrb[0].mxu0 %v129
  %v414 = vpop.f32.mrb[0].mxu0
  %v415 = vadd.f32 0.0, %v414
  %v416 = vpop.f32.mrb[0].mxu0
  %417 = vmatprep.mubr.f32.mxu0 0.0
  %418 = vmatmul.mubr.f32.gmra.mrb[0].mxu0 %v132
  %v419 = vpop.f32.mrb[0].mxu0
  %v420 = vadd.f32 0.0, %v419
  %v421 = vpop.f32.mrb[0].mxu0
  %422 = vmatprep.mubr.f32.mxu0 0.0
  %423 = vmatmul.mubr.f32.gmra.mrb[0].mxu0 %v135
  %v424 = vpop.f32.mrb[0].mxu0
  %v425 = vadd.f32 0.0, %v424
  %v426 = vpop.f32.mrb[0].mxu0
  %427 = vmatprep.mubr.f32.mxu0 0.0
  %428 = vmatmul.mubr.f32.gmra.mrb[0].mxu0 %v138
  %v429 = vpop.f32.mrb[0].mxu0
  %v430 = vadd.f32 0.0, %v429
  %v431 = vpop.f32.mrb[0].mxu0
  %432 = vmatprep.mubr.f32.mxu0 0.0
  %433 = vmatmul.mubr.f32.gmra.mrb[0].mxu0 %v141
  %v434 = vpop.f32.mrb[0].mxu0
  %v435 = vadd.f32 0.0, %v434
  %v436 = vpop.f32.mrb[0].mxu0
  %437 = vmatprep.mubr.f32.mxu0 0.0
  %438 = vmatmul.mubr.f32.gmra.mrb[0].mxu0 %v144
  %v439 = vpop.f32.mrb[0].mxu0
  %v440 = vadd.f32 0.0, %v439
  %v441 = vpop.f32.mrb[0].mxu0
  %442 = vmatprep.mubr.f32.mxu0 0.0
  %443 = vmatmul.mubr.f32.gmra.mrb[0].mxu0 %v147
  %v444 = vpop.f32.mrb[0].mxu0
  %v445 = vadd.f32 0.0, %v444
  %v446 = vpop.f32.mrb[0].mxu0
  %447 = vmatprep.mubr.f32.mxu0 0.0
  %448 = vmatmul.mubr.f32.gmra.mrb[0].mxu0 %v150
  %v449 = vpop.f32.mrb[0].mxu0
  %v450 = vadd.f32 0.0, %v449
  %v451 = vpop.f32.mrb[0].mxu0
  %452 = vmatprep.mubr.f32.mxu0 0.0
  %453 = vmatmul.mubr.f32.gmra.mrb[0].mxu0 %v153
  %v454 = vpop.f32.mrb[0].mxu0
  %v455 = vadd.f32 0.0, %v454
  %v456 = vpop.f32.mrb[0].mxu0
  %457 = vmatprep.mubr.f32.mxu0 0.0
  %458 = vmatmul.mubr.f32.gmra.mrb[0].mxu0 %v156
  %v459 = vpop.f32.mrb[0].mxu0
  %v460 = vadd.f32 0.0, %v459
  %v461 = vpop.f32.mrb[0].mxu0
  %462 = vmatprep.mubr.f32.mxu0 0.0
  %463 = vmatmul.mubr.f32.gmra.mrb[0].mxu0 %v159
  %v464 = vpop.f32.mrb[0].mxu0
  %v465 = vadd.f32 0.0, %v464
  %v466 = vpop.f32.mrb[0].mxu0
  %467 = vmatprep.mubr.f32.mxu0 0.0
  %468 = vmatmul.mubr.f32.gmra.mrb[0].mxu0 %v162
  %v469 = vpop.f32.mrb[0].mxu0
  %v470 = vadd.f32 0.0, %v469
  %v471 = vpop.f32.mrb[0].mxu0
  %472 = vmatprep.mubr.f32.mxu0 0.0
  %473 = vmatmul.mubr.f32.gmra.mrb[0].mxu0 %v165
  %v474 = vpop.f32.mrb[0].mxu0
  %v475 = vadd.f32 0.0, %v474
  %v476 = vpop.f32.mrb[0].mxu0
  %477 = vmatprep.mubr.f32.mxu0 0.0
  %478 = vmatmul.mubr.f32.gmra.mrb[0].mxu0 %v168
  %v479 = vpop.f32.mrb[0].mxu0
  %v480 = vadd.f32 0.0, %v479
  %v481 = vpop.f32.mrb[0].mxu0
  %482 = vmatprep.mubr.f32.mxu0 0.0
  %483 = vmatmul.mubr.f32.gmra.mrb[0].mxu0 %v171
  %v484 = vpop.f32.mrb[0].mxu0
  %v485 = vadd.f32 0.0, %v484
  %v486 = vpop.f32.mrb[0].mxu0
  %487 = vmatprep.mubr.f32.mxu0 0.0
  %488 = vmatmul.mubr.f32.gmra.mrb[0].mxu0 %v174
  %v489 = vpop.f32.mrb[0].mxu0
  %v490 = vadd.f32 0.0, %v489
  %v491 = vpop.f32.mrb[0].mxu0
  %492 = vmatprep.mubr.f32.mxu0 0.0
  %493 = vmatmul.mubr.f32.gmra.mrb[0].mxu0 %v177
  %v494 = vpop.f32.mrb[0].mxu0
  %v495 = vadd.f32 0.0, %v494
  %v496 = vpop.f32.mrb[0].mxu0
  %497 = vmatprep.mubr.f32.mxu0 0.0
  %498 = vmatmul.mubr.f32.gmra.mrb[0].mxu0 %v180
  %v499 = vpop.f32.mrb[0].mxu0
  %v500 = vadd.f32 0.0, %v499
  %v501 = vpop.f32.mrb[0].mxu0
  %502 = vmatprep.mubr.f32.mxu0 0.0
  %503 = vmatmul.mubr.f32.gmra.mrb[0].mxu0 %v183
  %v504 = vpop.f32.mrb[0].mxu0
  %v505 = vadd.f32 0.0, %v504
  %v506 = vpop.f32.mrb[0].mxu0
  %507 = vmatprep.mubr.f32.mxu0 0.0
  %508 = vmatmul.mubr.f32.gmra.mrb[0].mxu0 %v186
  %v509 = vpop.f32.mrb[0].mxu0
  %v510 = vadd.f32 0.0, %v509
  %v511 = vpop.f32.mrb[0].mxu0
  %512 = vmatprep.mubr.f32.mxu0 0.0
  %513 = vmatmul.mubr.f32.gmra.mrb[0].mxu0 %v189
  %v514 = vpop.f32.mrb[0].mxu0
  %v515 = vadd.f32 0.0, %v514
  %v516 = vpop.f32.mrb[0].mxu0
  %517 = vmatprep.mubr.f32.mxu0 0.0
  %518 = vmatmul.mubr.f32.gmra.mrb[0].mxu0 %v192
  %v519 = vpop.f32.mrb[0].mxu0
  %v520 = vadd.f32 0.0, %v519
  %v521 = vpop.f32.mrb[0].mxu0
  %522 = vmatprep.mubr.f32.mxu0 0.0
  %523 = vmatmul.mubr.f32.gmra.mrb[0].mxu0 %v195
  %v524 = vpop.f32.mrb[0].mxu0
  %v525 = vadd.f32 0.0, %v524
  %v526 = vpop.f32.mrb[0].mxu0
  %527 = vmatprep.mubr.f32.mxu0 0.0
  %528 = vmatmul.mubr.f32.gmra.mrb[0].mxu0 %v198
  %v529 = vpop.f32.mrb[0].mxu0
  %v530 = vadd.f32 0.0, %v529
  %v531 = vpop.f32.mrb[0].mxu0
  %532 = vmatprep.mubr.f32.mxu0 0.0
  %533 = vmatmul.mubr.f32.gmra.mrb[0].mxu0 %v201
  %v534 = vpop.f32.mrb[0].mxu0
  %v535 = vadd.f32 0.0, %v534
  %v536 = vpop.f32.mrb[0].mxu0
  %537 = vmatprep.mubr.f32.mxu0 0.0
  %538 = vmatmul.mubr.f32.gmra.mrb[0].mxu0 %v204
  %v539 = vpop.f32.mrb[0].mxu0
  %v540 = vadd.f32 0.0, %v539
  %v541 = vpop.f32.mrb[0].mxu0
  %542 = vmatprep.mubr.f32.mxu0 0.0
  %543 = vmatmul.mubr.f32.gmra.mrb[0].mxu0 %v207
  %v544 = vpop.f32.mrb[0].mxu0
  %v545 = vadd.f32 0.0, %v544
  %v546 = vpop.f32.mrb[0].mxu0
  %547 = vmatprep.mubr.f32.mxu0 0.0
  %548 = vmatmul.mubr.f32.gmra.mrb[0].mxu0 %v210
  %v549 = vpop.f32.mrb[0].mxu0
  %v550 = vadd.f32 0.0, %v549
  %v551 = vpop.f32.mrb[0].mxu0
  %552 = vmatprep.mubr.f32.mxu0 0.0
  %553 = vmatmul.mubr.f32.gmra.mrb[0].mxu0 %v213
  %v554 = vpop.f32.mrb[0].mxu0
  %v555 = vadd.f32 0.0, %v554
  %v556 = vpop.f32.mrb[0].mxu0
  %557 = vmatprep.mubr.f32.mxu0 0.0
  %558 = vmatmul.mubr.f32.gmra.mrb[0].mxu0 %v216
  %v559 = vpop.f32.mrb[0].mxu0
  %v560 = vadd.f32 0.0, %v559
  %v561 = vpop.f32.mrb[0].mxu0
  %562 = vmatprep.mubr.f32.mxu0 0.0
  %563 = vmatmul.mubr.f32.gmra.mrb[0].mxu0 %v219
  %v564 = vpop.f32.mrb[0].mxu0
  %v565 = vadd.f32 0.0, %v564
  %v566 = vpop.f32.mrb[0].mxu0
  %567 = vmatprep.mubr.f32.mxu0 0.0
  %568 = vmatmul.mubr.f32.gmra.mrb[0].mxu0 %v222
  %v569 = vpop.f32.mrb[0].mxu0
  %v570 = vadd.f32 0.0, %v569
  %v571 = vpop.f32.mrb[0].mxu0
  %572 = vmatprep.mubr.f32.mxu0 0.0
  %573 = vmatmul.mubr.f32.gmra.mrb[0].mxu0 %v225
  %v574 = vpop.f32.mrb[0].mxu0
  %v575 = vadd.f32 0.0, %v574
  %v576 = vpop.f32.mrb[0].mxu0
  %577 = vmatprep.mubr.f32.mxu0 0.0
  %578 = vmatmul.mubr.f32.gmra.mrb[0].mxu0 %v228
  %v579 = vpop.f32.mrb[0].mxu0
  %v580 = vadd.f32 0.0, %v579
  %v581 = vpop.f32.mrb[0].mxu0
  %582 = vmatprep.mubr.f32.mxu0 0.0
  %583 = vmatmul.mubr.f32.gmra.mrb[0].mxu0 %v231
  %v584 = vpop.f32.mrb[0].mxu0
  %v585 = vadd.f32 0.0, %v584
  %v586 = vpop.f32.mrb[0].mxu0
  %587 = vmatprep.mubr.f32.mxu0 0.0
  %588 = vmatmul.mubr.f32.gmra.mrb[0].mxu0 %v234
  %v589 = vpop.f32.mrb[0].mxu0
  %v590 = vadd.f32 0.0, %v589
  %v591 = vpop.f32.mrb[0].mxu0
  %592 = vmatprep.mubr.f32.mxu0 0.0
  %593 = vmatmul.mubr.f32.gmra.mrb[0].mxu0 %v237
  %v594 = vpop.f32.mrb[0].mxu0
  %v595 = vadd.f32 0.0, %v594
  %v596 = vpop.f32.mrb[0].mxu0
  %597 = vmatprep.mubr.f32.mxu0 0.0
  %598 = vmatmul.mubr.f32.gmra.mrb[0].mxu0 %v240
  %v599 = vpop.f32.mrb[0].mxu0
  %v600 = vadd.f32 0.0, %v599
  %v601 = vpop.f32.mrb[0].mxu0
  %602 = vmatprep.mubr.f32.mxu0 0.0
  %603 = vmatmul.mubr.f32.gmra.mrb[0].mxu0 %v243
  %v604 = vpop.f32.mrb[0].mxu0
  %v605 = vadd.f32 0.0, %v604
  %v606 = vpop.f32.mrb[0].mxu0
  %607 = vmatprep.mubr.f32.mxu0 0.0
  %608 = vmatmul.mubr.f32.gmra.mrb[0].mxu0 %v246
  %v609 = vpop.f32.mrb[0].mxu0
  %v610 = vadd.f32 0.0, %v609
  %v611 = vpop.f32.mrb[0].mxu0
  %612 = vmatprep.mubr.f32.mxu0 0.0
  %613 = vmatmul.mubr.f32.gmra.mrb[0].mxu0 %v249
  %v614 = vpop.f32.mrb[0].mxu0
  %v615 = vadd.f32 0.0, %v614
  %v616 = vpop.f32.mrb[0].mxu0
  %617 = vmatprep.mubr.f32.mxu0 0.0
  %618 = vmatmul.mubr.f32.gmra.mrb[0].mxu0 %v252
  %v619 = vpop.f32.mrb[0].mxu0
  %v620 = vadd.f32 0.0, %v619
  %v621 = vpop.f32.mrb[0].mxu0
  %622 = vmatprep.mubr.f32.mxu0 0.0
  %623 = vmatmul.mubr.f32.gmra.mrb[0].mxu0 %v255
  %v624 = vpop.f32.mrb[0].mxu0
  %v625 = vadd.f32 0.0, %v624
  %v626 = vpop.f32.mrb[0].mxu0
  %627 = vmatprep.mubr.f32.mxu0 0.0
  %628 = vmatmul.mubr.f32.gmra.mrb[0].mxu0 %v258
  %v629 = vpop.f32.mrb[0].mxu0
  %v630 = vadd.f32 0.0, %v629
  %v631 = vpop.f32.mrb[0].mxu0
  %632 = vmatprep.mubr.f32.mxu0 0.0
  %633 = vmatmul.mubr.f32.gmra.mrb[0].mxu0 %v261
  %v634 = vpop.f32.mrb[0].mxu0
  %v635 = vadd.f32 0.0, %v634
  %v636 = vpop.f32.mrb[0].mxu0
  %637 = vmatprep.mubr.f32.mxu0 0.0
  %638 = vmatmul.mubr.f32.gmra.mrb[0].mxu0 %v264
  %v639 = vpop.f32.mrb[0].mxu0
  %v640 = vadd.f32 0.0, %v639
  %v641 = vpop.f32.mrb[0].mxu0
  %642 = vmatprep.mubr.f32.mxu0 0.0
  %643 = vmatmul.mubr.f32.gmra.mrb[0].mxu0 %v267
  %v644 = vpop.f32.mrb[0].mxu0
  %v645 = vadd.f32 0.0, %v644
  %v646 = vpop.f32.mrb[0].mxu0
  %647 = vmatprep.mubr.f32.mxu0 0.0
  %648 = vmatmul.mubr.f32.gmra.mrb[0].mxu0 %v270
  %v649 = vpop.f32.mrb[0].mxu0
  %v650 = vadd.f32 0.0, %v649
  %v651 = vpop.f32.mrb[0].mxu0
  %652 = vmatprep.mubr.f32.mxu0 0.0
  %653 = vmatmul.mubr.f32.gmra.mrb[0].mxu0 %v273
  %v654 = vpop.f32.mrb[0].mxu0
  %v655 = vadd.f32 0.0, %v654
  %v656 = vpop.f32.mrb[0].mxu0
  %657 = vmatprep.mubr.f32.mxu0 0.0
  %658 = vmatmul.mubr.f32.gmra.mrb[0].mxu0 %v276
  %v659 = vpop.f32.mrb[0].mxu0
  %v660 = vadd.f32 0.0, %v659
  %v661 = vpop.f32.mrb[0].mxu0
  %662 = vdwg.mxu0
  %v663 = vsel %vm85, %v345, 0.0
  %v664 = vsel %vm85, %v350, 0.0
  %v665 = vadd.f32 %v663, %v664
  %v666 = vsel %vm85, %v355, 0.0
  %v667 = vadd.f32 %v665, %v666
  %v668 = vsel %vm85, %v360, 0.0
  %v669 = vadd.f32 %v667, %v668
  %v670 = vsel %vm85, %v365, 0.0
  %v671 = vadd.f32 %v669, %v670
  %v672 = vsel %vm85, %v370, 0.0
  %v673 = vadd.f32 %v671, %v672
  %v674 = vsel %vm85, %v375, 0.0
  %v675 = vadd.f32 %v673, %v674
  %v676 = vsel %vm85, %v380, 0.0
  %v677 = vadd.f32 %v675, %v676
  %v678 = vsel %vm85, %v385, 0.0
  %v679 = vadd.f32 %v677, %v678
  %v680 = vsel %vm85, %v390, 0.0
  %v681 = vadd.f32 %v679, %v680
  %v682 = vsel %vm85, %v395, 0.0
  %v683 = vadd.f32 %v681, %v682
  %v684 = vsel %vm85, %v400, 0.0
  %v685 = vadd.f32 %v683, %v684
  %v686 = vsel %vm85, %v405, 0.0
  %v687 = vadd.f32 %v685, %v686
  %v688 = vsel %vm85, %v410, 0.0
  %v689 = vadd.f32 %v687, %v688
  %v690 = vsel %vm85, %v415, 0.0
  %v691 = vadd.f32 %v689, %v690
  %v692 = vsel %vm85, %v420, 0.0
  %v693 = vadd.f32 %v691, %v692
  %v694 = vsel %vm85, %v425, 0.0
  %v695 = vadd.f32 %v693, %v694
  %v696 = vsel %vm85, %v430, 0.0
  %v697 = vadd.f32 %v695, %v696
  %v698 = vsel %vm85, %v435, 0.0
  %v699 = vadd.f32 %v697, %v698
  %v700 = vsel %vm85, %v440, 0.0
  %v701 = vadd.f32 %v699, %v700
  %v702 = vsel %vm85, %v445, 0.0
  %v703 = vadd.f32 %v701, %v702
  %v704 = vsel %vm85, %v450, 0.0
  %v705 = vadd.f32 %v703, %v704
  %v706 = vsel %vm85, %v455, 0.0
  %v707 = vadd.f32 %v705, %v706
  %v708 = vsel %vm85, %v460, 0.0
  %v709 = vadd.f32 %v707, %v708
  %v710 = vsel %vm85, %v465, 0.0
  %v711 = vadd.f32 %v709, %v710
  %v712 = vsel %vm85, %v470, 0.0
  %v713 = vadd.f32 %v711, %v712
  %v714 = vsel %vm85, %v475, 0.0
  %v715 = vadd.f32 %v713, %v714
  %v716 = vsel %vm85, %v480, 0.0
  %v717 = vadd.f32 %v715, %v716
  %v718 = vsel %vm85, %v485, 0.0
  %v719 = vadd.f32 %v717, %v718
  %v720 = vsel %vm85, %v490, 0.0
  %v721 = vadd.f32 %v719, %v720
  %v722 = vsel %vm85, %v495, 0.0
  %v723 = vadd.f32 %v721, %v722
  %v724 = vsel %vm85, %v500, 0.0
  %v725 = vadd.f32 %v723, %v724
  %v726 = vsel %vm85, %v505, 0.0
  %v727 = vadd.f32 %v725, %v726
  %v728 = vsel %vm85, %v510, 0.0
  %v729 = vadd.f32 %v727, %v728
  %v730 = vsel %vm85, %v515, 0.0
  %v731 = vadd.f32 %v729, %v730
  %v732 = vsel %vm85, %v520, 0.0
  %v733 = vadd.f32 %v731, %v732
  %v734 = vsel %vm85, %v525, 0.0
  %v735 = vadd.f32 %v733, %v734
  %v736 = vsel %vm85, %v530, 0.0
  %v737 = vadd.f32 %v735, %v736
  %v738 = vsel %vm85, %v535, 0.0
  %v739 = vadd.f32 %v737, %v738
  %v740 = vsel %vm85, %v540, 0.0
  %v741 = vadd.f32 %v739, %v740
  %v742 = vsel %vm85, %v545, 0.0
  %v743 = vadd.f32 %v741, %v742
  %v744 = vsel %vm85, %v550, 0.0
  %v745 = vadd.f32 %v743, %v744
  %v746 = vsel %vm85, %v555, 0.0
  %v747 = vadd.f32 %v745, %v746
  %v748 = vsel %vm85, %v560, 0.0
  %v749 = vadd.f32 %v747, %v748
  %v750 = vsel %vm85, %v565, 0.0
  %v751 = vadd.f32 %v749, %v750
  %v752 = vsel %vm85, %v570, 0.0
  %v753 = vadd.f32 %v751, %v752
  %v754 = vsel %vm85, %v575, 0.0
  %v755 = vadd.f32 %v753, %v754
  %v756 = vsel %vm85, %v580, 0.0
  %v757 = vadd.f32 %v755, %v756
  %v758 = vsel %vm85, %v585, 0.0
  %v759 = vadd.f32 %v757, %v758
  %v760 = vsel %vm85, %v590, 0.0
  %v761 = vadd.f32 %v759, %v760
  %v762 = vsel %vm85, %v595, 0.0
  %v763 = vadd.f32 %v761, %v762
  %v764 = vsel %vm85, %v600, 0.0
  %v765 = vadd.f32 %v763, %v764
  %v766 = vsel %vm85, %v605, 0.0
  %v767 = vadd.f32 %v765, %v766
  %v768 = vsel %vm85, %v610, 0.0
  %v769 = vadd.f32 %v767, %v768
  %v770 = vsel %vm85, %v615, 0.0
  %v771 = vadd.f32 %v769, %v770
  %v772 = vsel %vm85, %v620, 0.0
  %v773 = vadd.f32 %v771, %v772
  %v774 = vsel %vm85, %v625, 0.0
  %v775 = vadd.f32 %v773, %v774
  %v776 = vsel %vm85, %v630, 0.0
  %v777 = vadd.f32 %v775, %v776
  %v778 = vsel %vm85, %v635, 0.0
  %v779 = vadd.f32 %v777, %v778
  %v780 = vsel %vm85, %v640, 0.0
  %v781 = vadd.f32 %v779, %v780
  %v782 = vsel %vm85, %v645, 0.0
  %v783 = vadd.f32 %v781, %v782
  %v784 = vsel %vm85, %v650, 0.0
  %v785 = vadd.f32 %v783, %v784
  %v786 = vsel %vm85, %v655, 0.0
  %v787 = vadd.f32 %v785, %v786
  %v788 = vsel %vm85, %v660, 0.0
  %v789 = vadd.f32 %v787, %v788
  %v790 = vrot.slane %v789, 4
  %v791 = vadd.f32 %v789, %v790
  %v792 = vrot.slane %v791, 2
  %v793 = vadd.f32 %v791, %v792
  %v794 = vrot.slane %v793, 1
  %v795 = vadd.f32 %v793, %v794
  %v796 = vmul.f32 %v345, %v345
  %v797 = vmul.f32 %v350, %v350
  %v798 = vmul.f32 %v355, %v355
  %v799 = vmul.f32 %v360, %v360
  %v800 = vmul.f32 %v365, %v365
  %v801 = vmul.f32 %v370, %v370
  %v802 = vmul.f32 %v375, %v375
  %v803 = vmul.f32 %v380, %v380
  %v804 = vmul.f32 %v385, %v385
  %v805 = vmul.f32 %v390, %v390
  %v806 = vmul.f32 %v395, %v395
  %v807 = vmul.f32 %v400, %v400
  %v808 = vmul.f32 %v405, %v405
  %v809 = vmul.f32 %v410, %v410
  %v810 = vmul.f32 %v415, %v415
  %v811 = vmul.f32 %v420, %v420
  %v812 = vmul.f32 %v425, %v425
  %v813 = vmul.f32 %v430, %v430
  %v814 = vmul.f32 %v435, %v435
  %v815 = vmul.f32 %v440, %v440
  %v816 = vmul.f32 %v445, %v445
  %v817 = vmul.f32 %v450, %v450
  %v818 = vmul.f32 %v455, %v455
  %v819 = vmul.f32 %v460, %v460
  %v820 = vmul.f32 %v465, %v465
  %v821 = vmul.f32 %v470, %v470
  %v822 = vmul.f32 %v475, %v475
  %v823 = vmul.f32 %v480, %v480
  %v824 = vmul.f32 %v485, %v485
  %v825 = vmul.f32 %v490, %v490
  %v826 = vmul.f32 %v495, %v495
  %v827 = vmul.f32 %v500, %v500
  %v828 = vmul.f32 %v505, %v505
  %v829 = vmul.f32 %v510, %v510
  %v830 = vmul.f32 %v515, %v515
  %v831 = vmul.f32 %v520, %v520
  %v832 = vmul.f32 %v525, %v525
  %v833 = vmul.f32 %v530, %v530
  %v834 = vmul.f32 %v535, %v535
  %v835 = vmul.f32 %v540, %v540
  %v836 = vmul.f32 %v545, %v545
  %v837 = vmul.f32 %v550, %v550
  %v838 = vmul.f32 %v555, %v555
  %v839 = vmul.f32 %v560, %v560
  %v840 = vmul.f32 %v565, %v565
  %v841 = vmul.f32 %v570, %v570
  %v842 = vmul.f32 %v575, %v575
  %v843 = vmul.f32 %v580, %v580
  %v844 = vmul.f32 %v585, %v585
  %v845 = vmul.f32 %v590, %v590
  %v846 = vmul.f32 %v595, %v595
  %v847 = vmul.f32 %v600, %v600
  %v848 = vmul.f32 %v605, %v605
  %v849 = vmul.f32 %v610, %v610
  %v850 = vmul.f32 %v615, %v615
  %v851 = vmul.f32 %v620, %v620
  %v852 = vmul.f32 %v625, %v625
  %v853 = vmul.f32 %v630, %v630
  %v854 = vmul.f32 %v635, %v635
  %v855 = vmul.f32 %v640, %v640
  %v856 = vmul.f32 %v645, %v645
  %v857 = vmul.f32 %v650, %v650
  %v858 = vmul.f32 %v655, %v655
  %v859 = vmul.f32 %v660, %v660
  %v860 = vsel %vm85, %v796, 0.0
  %v861 = vsel %vm85, %v797, 0.0
  %v862 = vadd.f32 %v860, %v861
  %v863 = vsel %vm85, %v798, 0.0
  %v864 = vadd.f32 %v862, %v863
  %v865 = vsel %vm85, %v799, 0.0
  %v866 = vadd.f32 %v864, %v865
  %v867 = vsel %vm85, %v800, 0.0
  %v868 = vadd.f32 %v866, %v867
  %v869 = vsel %vm85, %v801, 0.0
  %v870 = vadd.f32 %v868, %v869
  %v871 = vsel %vm85, %v802, 0.0
  %v872 = vadd.f32 %v870, %v871
  %v873 = vsel %vm85, %v803, 0.0
  %v874 = vadd.f32 %v872, %v873
  %v875 = vsel %vm85, %v804, 0.0
  %v876 = vadd.f32 %v874, %v875
  %v877 = vsel %vm85, %v805, 0.0
  %v878 = vadd.f32 %v876, %v877
  %v879 = vsel %vm85, %v806, 0.0
  %v880 = vadd.f32 %v878, %v879
  %v881 = vsel %vm85, %v807, 0.0
  %v882 = vadd.f32 %v880, %v881
  %v883 = vsel %vm85, %v808, 0.0
  %v884 = vadd.f32 %v882, %v883
  %v885 = vsel %vm85, %v809, 0.0
  %v886 = vadd.f32 %v884, %v885
  %v887 = vsel %vm85, %v810, 0.0
  %v888 = vadd.f32 %v886, %v887
  %v889 = vsel %vm85, %v811, 0.0
  %v890 = vadd.f32 %v888, %v889
  %v891 = vsel %vm85, %v812, 0.0
  %v892 = vadd.f32 %v890, %v891
  %v893 = vsel %vm85, %v813, 0.0
  %v894 = vadd.f32 %v892, %v893
  %v895 = vsel %vm85, %v814, 0.0
  %v896 = vadd.f32 %v894, %v895
  %v897 = vsel %vm85, %v815, 0.0
  %v898 = vadd.f32 %v896, %v897
  %v899 = vsel %vm85, %v816, 0.0
  %v900 = vadd.f32 %v898, %v899
  %v901 = vsel %vm85, %v817, 0.0
  %v902 = vadd.f32 %v900, %v901
  %v903 = vsel %vm85, %v818, 0.0
  %v904 = vadd.f32 %v902, %v903
  %v905 = vsel %vm85, %v819, 0.0
  %v906 = vadd.f32 %v904, %v905
  %v907 = vsel %vm85, %v820, 0.0
  %v908 = vadd.f32 %v906, %v907
  %v909 = vsel %vm85, %v821, 0.0
  %v910 = vadd.f32 %v908, %v909
  %v911 = vsel %vm85, %v822, 0.0
  %v912 = vadd.f32 %v910, %v911
  %v913 = vsel %vm85, %v823, 0.0
  %v914 = vadd.f32 %v912, %v913
  %v915 = vsel %vm85, %v824, 0.0
  %v916 = vadd.f32 %v914, %v915
  %v917 = vsel %vm85, %v825, 0.0
  %v918 = vadd.f32 %v916, %v917
  %v919 = vsel %vm85, %v826, 0.0
  %v920 = vadd.f32 %v918, %v919
  %v921 = vsel %vm85, %v827, 0.0
  %v922 = vadd.f32 %v920, %v921
  %v923 = vsel %vm85, %v828, 0.0
  %v924 = vadd.f32 %v922, %v923
  %v925 = vsel %vm85, %v829, 0.0
  %v926 = vadd.f32 %v924, %v925
  %v927 = vsel %vm85, %v830, 0.0
  %v928 = vadd.f32 %v926, %v927
  %v929 = vsel %vm85, %v831, 0.0
  %v930 = vadd.f32 %v928, %v929
  %v931 = vsel %vm85, %v832, 0.0
  %v932 = vadd.f32 %v930, %v931
  %v933 = vsel %vm85, %v833, 0.0
  %v934 = vadd.f32 %v932, %v933
  %v935 = vsel %vm85, %v834, 0.0
  %v936 = vadd.f32 %v934, %v935
  %v937 = vsel %vm85, %v835, 0.0
  %v938 = vadd.f32 %v936, %v937
  %v939 = vsel %vm85, %v836, 0.0
  %v940 = vadd.f32 %v938, %v939
  %v941 = vsel %vm85, %v837, 0.0
  %v942 = vadd.f32 %v940, %v941
  %v943 = vsel %vm85, %v838, 0.0
  %v944 = vadd.f32 %v942, %v943
  %v945 = vsel %vm85, %v839, 0.0
  %v946 = vadd.f32 %v944, %v945
  %v947 = vsel %vm85, %v840, 0.0
  %v948 = vadd.f32 %v946, %v947
  %v949 = vsel %vm85, %v841, 0.0
  %v950 = vadd.f32 %v948, %v949
  %v951 = vsel %vm85, %v842, 0.0
  %v952 = vadd.f32 %v950, %v951
  %v953 = vsel %vm85, %v843, 0.0
  %v954 = vadd.f32 %v952, %v953
  %v955 = vsel %vm85, %v844, 0.0
  %v956 = vadd.f32 %v954, %v955
  %v957 = vsel %vm85, %v845, 0.0
  %v958 = vadd.f32 %v956, %v957
  %v959 = vsel %vm85, %v846, 0.0
  %v960 = vadd.f32 %v958, %v959
  %v961 = vsel %vm85, %v847, 0.0
  %v962 = vadd.f32 %v960, %v961
  %v963 = vsel %vm85, %v848, 0.0
  %v964 = vadd.f32 %v962, %v963
  %v965 = vsel %vm85, %v849, 0.0
  %v966 = vadd.f32 %v964, %v965
  %v967 = vsel %vm85, %v850, 0.0
  %v968 = vadd.f32 %v966, %v967
  %v969 = vsel %vm85, %v851, 0.0
  %v970 = vadd.f32 %v968, %v969
  %v971 = vsel %vm85, %v852, 0.0
  %v972 = vadd.f32 %v970, %v971
  %v973 = vsel %vm85, %v853, 0.0
  %v974 = vadd.f32 %v972, %v973
  %v975 = vsel %vm85, %v854, 0.0
  %v976 = vadd.f32 %v974, %v975
  %v977 = vsel %vm85, %v855, 0.0
  %v978 = vadd.f32 %v976, %v977
  %v979 = vsel %vm85, %v856, 0.0
  %v980 = vadd.f32 %v978, %v979
  %v981 = vsel %vm85, %v857, 0.0
  %v982 = vadd.f32 %v980, %v981
  %v983 = vsel %vm85, %v858, 0.0
  %v984 = vadd.f32 %v982, %v983
  %v985 = vsel %vm85, %v859, 0.0
  %v986 = vadd.f32 %v984, %v985
  %v987 = vrot.slane %v986, 4
  %v988 = vadd.f32 %v986, %v987
  %v989 = vrot.slane %v988, 2
  %v990 = vadd.f32 %v988, %v989
  %v991 = vrot.slane %v990, 1
  %v992 = vadd.f32 %v990, %v991
  %v993 = vmul.f32 %v795, 0.001953125
  %v994 = vmul.f32 %v992, 0.001953125
  %v995 = vmul.f32 %v993, %v993
  %v996 = vsub.f32 %v994, %v995
  %v997 = vmax.f32 %v996, 0.0
  %v998 = vld [vmem:[%s2] sm:$0x1]
  %v999 = vadd.f32 %v997, 1e-05
  %v1000 = vrsqrt.pop %v999
  %v1001 = vmul.f32 %v998, %v1000
  %v1002 = vsub.f32 %v345, %v993
  %v1003 = vsub.f32 %v350, %v993
  %v1004 = vsub.f32 %v355, %v993
  %v1005 = vsub.f32 %v360, %v993
  %v1006 = vsub.f32 %v365, %v993
  %v1007 = vsub.f32 %v370, %v993
  %v1008 = vsub.f32 %v375, %v993
  %v1009 = vsub.f32 %v380, %v993
  %v1010 = vsub.f32 %v385, %v993
  %v1011 = vsub.f32 %v390, %v993
  %v1012 = vsub.f32 %v395, %v993
  %v1013 = vsub.f32 %v400, %v993
  %v1014 = vsub.f32 %v405, %v993
  %v1015 = vsub.f32 %v410, %v993
  %v1016 = vsub.f32 %v415, %v993
  %v1017 = vsub.f32 %v420, %v993
  %v1018 = vsub.f32 %v425, %v993
  %v1019 = vsub.f32 %v430, %v993
  %v1020 = vsub.f32 %v435, %v993
  %v1021 = vsub.f32 %v440, %v993
  %v1022 = vsub.f32 %v445, %v993
  %v1023 = vsub.f32 %v450, %v993
  %v1024 = vsub.f32 %v455, %v993
  %v1025 = vsub.f32 %v460, %v993
  %v1026 = vsub.f32 %v465, %v993
  %v1027 = vsub.f32 %v470, %v993
  %v1028 = vsub.f32 %v475, %v993
  %v1029 = vsub.f32 %v480, %v993
  %v1030 = vsub.f32 %v485, %v993
  %v1031 = vsub.f32 %v490, %v993
  %v1032 = vsub.f32 %v495, %v993
  %v1033 = vsub.f32 %v500, %v993
  %v1034 = vsub.f32 %v505, %v993
  %v1035 = vsub.f32 %v510, %v993
  %v1036 = vsub.f32 %v515, %v993
  %v1037 = vsub.f32 %v520, %v993
  %v1038 = vsub.f32 %v525, %v993
  %v1039 = vsub.f32 %v530, %v993
  %v1040 = vsub.f32 %v535, %v993
  %v1041 = vsub.f32 %v540, %v993
  %v1042 = vsub.f32 %v545, %v993
  %v1043 = vsub.f32 %v550, %v993
  %v1044 = vsub.f32 %v555, %v993
  %v1045 = vsub.f32 %v560, %v993
  %v1046 = vsub.f32 %v565, %v993
  %v1047 = vsub.f32 %v570, %v993
  %v1048 = vsub.f32 %v575, %v993
  %v1049 = vsub.f32 %v580, %v993
  %v1050 = vsub.f32 %v585, %v993
  %v1051 = vsub.f32 %v590, %v993
  %v1052 = vsub.f32 %v595, %v993
  %v1053 = vsub.f32 %v600, %v993
  %v1054 = vsub.f32 %v605, %v993
  %v1055 = vsub.f32 %v610, %v993
  %v1056 = vsub.f32 %v615, %v993
  %v1057 = vsub.f32 %v620, %v993
  %v1058 = vsub.f32 %v625, %v993
  %v1059 = vsub.f32 %v630, %v993
  %v1060 = vsub.f32 %v635, %v993
  %v1061 = vsub.f32 %v640, %v993
  %v1062 = vsub.f32 %v645, %v993
  %v1063 = vsub.f32 %v650, %v993
  %v1064 = vsub.f32 %v655, %v993
  %v1065 = vsub.f32 %v660, %v993
  %v1067 = vlaneseq
  %v1068 = vshrl.u32 %v1067, 7
  %v1069 = vsub.s32 0, %v1068
  %v1070 = vrot.slane %v1001, %v1069
  %v1072 = vmul.f32 %v1002, %v1070
  %v1073 = vmul.f32 %v1003, %v1070
  %v1074 = vmul.f32 %v1004, %v1070
  %v1075 = vmul.f32 %v1005, %v1070
  %v1076 = vmul.f32 %v1006, %v1070
  %v1077 = vmul.f32 %v1007, %v1070
  %v1078 = vmul.f32 %v1008, %v1070
  %v1079 = vmul.f32 %v1009, %v1070
  %v1080 = vmul.f32 %v1010, %v1070
  %v1081 = vmul.f32 %v1011, %v1070
  %v1082 = vmul.f32 %v1012, %v1070
  %v1083 = vmul.f32 %v1013, %v1070
  %v1084 = vmul.f32 %v1014, %v1070
  %v1085 = vmul.f32 %v1015, %v1070
  %v1086 = vmul.f32 %v1016, %v1070
  %v1087 = vmul.f32 %v1017, %v1070
  %v1088 = vmul.f32 %v1018, %v1070
  %v1089 = vmul.f32 %v1019, %v1070
  %v1090 = vmul.f32 %v1020, %v1070
  %v1091 = vmul.f32 %v1021, %v1070
  %v1092 = vmul.f32 %v1022, %v1070
  %v1093 = vmul.f32 %v1023, %v1070
  %v1094 = vmul.f32 %v1024, %v1070
  %v1095 = vmul.f32 %v1025, %v1070
  %v1096 = vmul.f32 %v1026, %v1070
  %v1097 = vmul.f32 %v1027, %v1070
  %v1098 = vmul.f32 %v1028, %v1070
  %v1099 = vmul.f32 %v1029, %v1070
  %v1100 = vmul.f32 %v1030, %v1070
  %v1101 = vmul.f32 %v1031, %v1070
  %v1102 = vmul.f32 %v1032, %v1070
  %v1103 = vmul.f32 %v1033, %v1070
  %v1104 = vmul.f32 %v1034, %v1070
  %v1105 = vmul.f32 %v1035, %v1070
  %v1106 = vmul.f32 %v1036, %v1070
  %v1107 = vmul.f32 %v1037, %v1070
  %v1108 = vmul.f32 %v1038, %v1070
  %v1109 = vmul.f32 %v1039, %v1070
  %v1110 = vmul.f32 %v1040, %v1070
  %v1111 = vmul.f32 %v1041, %v1070
  %v1112 = vmul.f32 %v1042, %v1070
  %v1113 = vmul.f32 %v1043, %v1070
  %v1114 = vmul.f32 %v1044, %v1070
  %v1115 = vmul.f32 %v1045, %v1070
  %v1116 = vmul.f32 %v1046, %v1070
  %v1117 = vmul.f32 %v1047, %v1070
  %v1118 = vmul.f32 %v1048, %v1070
  %v1119 = vmul.f32 %v1049, %v1070
  %v1120 = vmul.f32 %v1050, %v1070
  %v1121 = vmul.f32 %v1051, %v1070
  %v1122 = vmul.f32 %v1052, %v1070
  %v1123 = vmul.f32 %v1053, %v1070
  %v1124 = vmul.f32 %v1054, %v1070
  %v1125 = vmul.f32 %v1055, %v1070
  %v1126 = vmul.f32 %v1056, %v1070
  %v1127 = vmul.f32 %v1057, %v1070
  %v1128 = vmul.f32 %v1058, %v1070
  %v1129 = vmul.f32 %v1059, %v1070
  %v1130 = vmul.f32 %v1060, %v1070
  %v1131 = vmul.f32 %v1061, %v1070
  %v1132 = vmul.f32 %v1062, %v1070
  %v1133 = vmul.f32 %v1063, %v1070
  %v1134 = vmul.f32 %v1064, %v1070
  %v1135 = vmul.f32 %v1065, %v1070
  %v1136 = vld [vmem:[%s3] sm:$0x1]
  %v1138 = vlaneseq
  %v1139 = vshrl.u32 %v1138, 7
  %v1140 = vsub.s32 0, %v1139
  %v1141 = vrot.slane %v1136, %v1140
  %v1143 = vadd.f32 %v1072, %v1141
  %v1144 = vadd.f32 %v1073, %v1141
  %v1145 = vadd.f32 %v1074, %v1141
  %v1146 = vadd.f32 %v1075, %v1141
  %v1147 = vadd.f32 %v1076, %v1141
  %v1148 = vadd.f32 %v1077, %v1141
  %v1149 = vadd.f32 %v1078, %v1141
  %v1150 = vadd.f32 %v1079, %v1141
  %v1151 = vadd.f32 %v1080, %v1141
  %v1152 = vadd.f32 %v1081, %v1141
  %v1153 = vadd.f32 %v1082, %v1141
  %v1154 = vadd.f32 %v1083, %v1141
  %v1155 = vadd.f32 %v1084, %v1141
  %v1156 = vadd.f32 %v1085, %v1141
  %v1157 = vadd.f32 %v1086, %v1141
  %v1158 = vadd.f32 %v1087, %v1141
  %v1159 = vadd.f32 %v1088, %v1141
  %v1160 = vadd.f32 %v1089, %v1141
  %v1161 = vadd.f32 %v1090, %v1141
  %v1162 = vadd.f32 %v1091, %v1141
  %v1163 = vadd.f32 %v1092, %v1141
  %v1164 = vadd.f32 %v1093, %v1141
  %v1165 = vadd.f32 %v1094, %v1141
  %v1166 = vadd.f32 %v1095, %v1141
  %v1167 = vadd.f32 %v1096, %v1141
  %v1168 = vadd.f32 %v1097, %v1141
  %v1169 = vadd.f32 %v1098, %v1141
  %v1170 = vadd.f32 %v1099, %v1141
  %v1171 = vadd.f32 %v1100, %v1141
  %v1172 = vadd.f32 %v1101, %v1141
  %v1173 = vadd.f32 %v1102, %v1141
  %v1174 = vadd.f32 %v1103, %v1141
  %v1175 = vadd.f32 %v1104, %v1141
  %v1176 = vadd.f32 %v1105, %v1141
  %v1177 = vadd.f32 %v1106, %v1141
  %v1178 = vadd.f32 %v1107, %v1141
  %v1179 = vadd.f32 %v1108, %v1141
  %v1180 = vadd.f32 %v1109, %v1141
  %v1181 = vadd.f32 %v1110, %v1141
  %v1182 = vadd.f32 %v1111, %v1141
  %v1183 = vadd.f32 %v1112, %v1141
  %v1184 = vadd.f32 %v1113, %v1141
  %v1185 = vadd.f32 %v1114, %v1141
  %v1186 = vadd.f32 %v1115, %v1141
  %v1187 = vadd.f32 %v1116, %v1141
  %v1188 = vadd.f32 %v1117, %v1141
  %v1189 = vadd.f32 %v1118, %v1141
  %v1190 = vadd.f32 %v1119, %v1141
  %v1191 = vadd.f32 %v1120, %v1141
  %v1192 = vadd.f32 %v1121, %v1141
  %v1193 = vadd.f32 %v1122, %v1141
  %v1194 = vadd.f32 %v1123, %v1141
  %v1195 = vadd.f32 %v1124, %v1141
  %v1196 = vadd.f32 %v1125, %v1141
  %v1197 = vadd.f32 %v1126, %v1141
  %v1198 = vadd.f32 %v1127, %v1141
  %v1199 = vadd.f32 %v1128, %v1141
  %v1200 = vadd.f32 %v1129, %v1141
  %v1201 = vadd.f32 %v1130, %v1141
  %v1202 = vadd.f32 %v1131, %v1141
  %v1203 = vadd.f32 %v1132, %v1141
  %v1204 = vadd.f32 %v1133, %v1141
  %v1205 = vadd.f32 %v1134, %v1141
  %v1206 = vadd.f32 %v1135, %v1141
  %1207 = vst.msk [vmem:[%s4] sm:$0xff] %vm85, %v1143
  %1208 = vst.msk [vmem:[%s4 + $0x8] sm:$0xff] %vm85, %v1144
  %1209 = vst.msk [vmem:[%s4 + $0x10] sm:$0xff] %vm85, %v1145
  %1210 = vst.msk [vmem:[%s4 + $0x18] sm:$0xff] %vm85, %v1146
  %1211 = vst.msk [vmem:[%s4 + $0x20] sm:$0xff] %vm85, %v1147
  %1212 = vst.msk [vmem:[%s4 + $0x28] sm:$0xff] %vm85, %v1148
  %1213 = vst.msk [vmem:[%s4 + $0x30] sm:$0xff] %vm85, %v1149
  %1214 = vst.msk [vmem:[%s4 + $0x38] sm:$0xff] %vm85, %v1150
  %1215 = vst.msk [vmem:[%s4 + $0x40] sm:$0xff] %vm85, %v1151
  %1216 = vst.msk [vmem:[%s4 + $0x48] sm:$0xff] %vm85, %v1152
  %1217 = vst.msk [vmem:[%s4 + $0x50] sm:$0xff] %vm85, %v1153
  %1218 = vst.msk [vmem:[%s4 + $0x58] sm:$0xff] %vm85, %v1154
  %1219 = vst.msk [vmem:[%s4 + $0x60] sm:$0xff] %vm85, %v1155
  %1220 = vst.msk [vmem:[%s4 + $0x68] sm:$0xff] %vm85, %v1156
  %1221 = vst.msk [vmem:[%s4 + $0x70] sm:$0xff] %vm85, %v1157
  %1222 = vst.msk [vmem:[%s4 + $0x78] sm:$0xff] %vm85, %v1158
  %1223 = vst.msk [vmem:[%s4 + $0x80] sm:$0xff] %vm85, %v1159
  %1224 = vst.msk [vmem:[%s4 + $0x88] sm:$0xff] %vm85, %v1160
  %1225 = vst.msk [vmem:[%s4 + $0x90] sm:$0xff] %vm85, %v1161
  %1226 = vst.msk [vmem:[%s4 + $0x98] sm:$0xff] %vm85, %v1162
  %1227 = vst.msk [vmem:[%s4 + $0xa0] sm:$0xff] %vm85, %v1163
  %1228 = vst.msk [vmem:[%s4 + $0xa8] sm:$0xff] %vm85, %v1164
  %1229 = vst.msk [vmem:[%s4 + $0xb0] sm:$0xff] %vm85, %v1165
  %1230 = vst.msk [vmem:[%s4 + $0xb8] sm:$0xff] %vm85, %v1166
  %1231 = vst.msk [vmem:[%s4 + $0xc0] sm:$0xff] %vm85, %v1167
  %1232 = vst.msk [vmem:[%s4 + $0xc8] sm:$0xff] %vm85, %v1168
  %1233 = vst.msk [vmem:[%s4 + $0xd0] sm:$0xff] %vm85, %v1169
  %1234 = vst.msk [vmem:[%s4 + $0xd8] sm:$0xff] %vm85, %v1170
  %1235 = vst.msk [vmem:[%s4 + $0xe0] sm:$0xff] %vm85, %v1171
  %1236 = vst.msk [vmem:[%s4 + $0xe8] sm:$0xff] %vm85, %v1172
  %1237 = vst.msk [vmem:[%s4 + $0xf0] sm:$0xff] %vm85, %v1173
  %1238 = vst.msk [vmem:[%s4 + $0xf8] sm:$0xff] %vm85, %v1174
  %1239 = vst.msk [vmem:[%s4 + $0x100] sm:$0xff] %vm85, %v1175
  %1240 = vst.msk [vmem:[%s4 + $0x108] sm:$0xff] %vm85, %v1176
  %1241 = vst.msk [vmem:[%s4 + $0x110] sm:$0xff] %vm85, %v1177
  %1242 = vst.msk [vmem:[%s4 + $0x118] sm:$0xff] %vm85, %v1178
  %1243 = vst.msk [vmem:[%s4 + $0x120] sm:$0xff] %vm85, %v1179
  %1244 = vst.msk [vmem:[%s4 + $0x128] sm:$0xff] %vm85, %v1180
  %1245 = vst.msk [vmem:[%s4 + $0x130] sm:$0xff] %vm85, %v1181
  %1246 = vst.msk [vmem:[%s4 + $0x138] sm:$0xff] %vm85, %v1182
  %1247 = vst.msk [vmem:[%s4 + $0x140] sm:$0xff] %vm85, %v1183
  %1248 = vst.msk [vmem:[%s4 + $0x148] sm:$0xff] %vm85, %v1184
  %1249 = vst.msk [vmem:[%s4 + $0x150] sm:$0xff] %vm85, %v1185
  %1250 = vst.msk [vmem:[%s4 + $0x158] sm:$0xff] %vm85, %v1186
  %1251 = vst.msk [vmem:[%s4 + $0x160] sm:$0xff] %vm85, %v1187
  %1252 = vst.msk [vmem:[%s4 + $0x168] sm:$0xff] %vm85, %v1188
  %1253 = vst.msk [vmem:[%s4 + $0x170] sm:$0xff] %vm85, %v1189
  %1254 = vst.msk [vmem:[%s4 + $0x178] sm:$0xff] %vm85, %v1190
  %1255 = vst.msk [vmem:[%s4 + $0x180] sm:$0xff] %vm85, %v1191
  %1256 = vst.msk [vmem:[%s4 + $0x188] sm:$0xff] %vm85, %v1192
  %1257 = vst.msk [vmem:[%s4 + $0x190] sm:$0xff] %vm85, %v1193
  %1258 = vst.msk [vmem:[%s4 + $0x198] sm:$0xff] %vm85, %v1194
  %1259 = vst.msk [vmem:[%s4 + $0x1a0] sm:$0xff] %vm85, %v1195
  %1260 = vst.msk [vmem:[%s4 + $0x1a8] sm:$0xff] %vm85, %v1196
  %1261 = vst.msk [vmem:[%s4 + $0x1b0] sm:$0xff] %vm85, %v1197
  %1262 = vst.msk [vmem:[%s4 + $0x1b8] sm:$0xff] %vm85, %v1198
  %1263 = vst.msk [vmem:[%s4 + $0x1c0] sm:$0xff] %vm85, %v1199
  %1264 = vst.msk [vmem:[%s4 + $0x1c8] sm:$0xff] %vm85, %v1200
  %1265 = vst.msk [vmem:[%s4 + $0x1d0] sm:$0xff] %vm85, %v1201
  %1266 = vst.msk [vmem:[%s4 + $0x1d8] sm:$0xff] %vm85, %v1202
  %1267 = vst.msk [vmem:[%s4 + $0x1e0] sm:$0xff] %vm85, %v1203
  %1268 = vst.msk [vmem:[%s4 + $0x1e8] sm:$0xff] %vm85, %v1204
  %1269 = vst.msk [vmem:[%s4 + $0x1f0] sm:$0xff] %vm85, %v1205
  %1270 = vst.msk [vmem:[%s4 + $0x1f8] sm:$0xff] %vm85, %v1206
  // Predicated region
  $region18: #{tpu_custom_call.1} parent=0 // pred_check
    _
  $region19: #{tpu_custom_call.1} parent=0 // pred_check_branch
    %1272 = sbr.rel (0) target = $region21
  $region20: #{tpu_custom_call.1} parent=0 // pred_region
    _
  $region21: #{tpu_custom_call.1} parent=0 // pred_fallthru
    _
  // Predicated region
  $region22: #{tpu_custom_call.1} parent=0 // pred_check
    _
  $region23: #{tpu_custom_call.1} parent=0 // pred_check_branch
    %1274 = sbr.rel (0) target = $region25
  $region24: #{tpu_custom_call.1} parent=0 // pred_region
    _
  $region25: #{tpu_custom_call.1} parent=0 // pred_fallthru
    _

</llo_original>
